<compile_context>
chip_gen: v7x
topology: tpu7x:2x2x1
jax: 0.10.0
libtpu: 0.0.40
codegen_flags: <defaults>
</compile_context>

<pallas_src>
import functools

import jax
import jax.numpy as jnp
from jax.experimental import pallas as pl
from jax.experimental.pallas import tpu as pltpu

LANE = 128        # lane width
SUBLANE = 8       # f32 sublane multiple
MAX_ROW_TILE = 512


def _round_up(x, m):
    return ((x + m - 1) // m) * m


# ---------------------------------------------------------------------------
# Kernel: fused  (x / (||x||_2 + 1e-6)) @ W + b
# ---------------------------------------------------------------------------
def _l2norm_linear_kernel(x_ref, w_ref, b_ref, o_ref):
    # Upcast to f32 happens HERE, not in the wrapper, so the HBM activation
    # stream stays in the caller's native dtype (bf16/f16 halves the read).
    x = x_ref[...].astype(jnp.float32)                          # (tm, Kp) f32
    nrm = jnp.sqrt(jnp.sum(x * x, axis=-1, keepdims=True))      # (tm, 1)  VPU
    xn = x * pl.reciprocal(nrm + 1e-6, approx=True)             # divide -> EUP slot
    # Matmul on the MXU with bf16 operands, f32 accumulation.
    y = jnp.dot(xn.astype(jnp.bfloat16), w_ref[...],
                preferred_element_type=jnp.float32)             # (tm, Np) f32
    o_ref[...] = y + b_ref[...]


# ---------------------------------------------------------------------------
# Parameter packing (done once, outside the forward)
# ---------------------------------------------------------------------------
def pack_embed_params(w, b):
    """Pad K/N to TPU-friendly multiples and cast weights to bf16 once.

    w: (lang_feat_dim, hidden_size) f32, b: (hidden_size,) f32.
    Zero-padding N up to a multiple of 128 makes the kernel's output stores
    lane-dense (unmasked vst); consumers either slice the logical columns back
    out or accept the padded slab directly.
    """
    K, N = w.shape
    Kp = _round_up(K, LANE)
    Np = _round_up(N, LANE)
    wp = jnp.zeros((Kp, Np), jnp.bfloat16).at[:K, :N].set(w.astype(jnp.bfloat16))
    bp = jnp.zeros((1, Np), jnp.float32).at[0, :N].set(b.astype(jnp.float32))
    return wp, bp


# ---------------------------------------------------------------------------
# Forward wrapper
# ---------------------------------------------------------------------------
@functools.partial(jax.jit, static_argnames=("n_out", "return_padded"))
def language_extractor_forward(lang_feats, w_packed, b_packed, *, n_out,
                               return_padded=False):
    """lang_feats: (M, lang_feat_dim) pre-encoded CLIP text features, any dtype."""
    M, K = lang_feats.shape
    Kp, Np = w_packed.shape

    # Rare path: CLIP widths (512/768/1024) are multiples of 128 already; only
    # pad the reduction axis if a non-aligned lang_feat_dim shows up.
    if K != Kp:
        lang_feats = jnp.pad(lang_feats, ((0, 0), (0, Kp - K)))

    # Row tiling: one full-height block for small batches (block rows == array
    # rows, so no 8-row round-up / padding needed); otherwise 8-aligned tiles,
    # capped at MAX_ROW_TILE and sized so there are >=2 grid steps to keep both
    # of v7x's TensorCores busy.  The partial last block (e.g. M=600, tm=304)
    # is handled by Pallas — no jnp.pad copy in HBM.
    if M <= MAX_ROW_TILE:
        tm = M
    else:
        tm = min(MAX_ROW_TILE, _round_up(pl.cdiv(M, 2), SUBLANE))
    num_blocks = pl.cdiv(M, tm)

    in_bytes = jnp.dtype(lang_feats.dtype).itemsize
    cost = pl.CostEstimate(
        flops=2 * M * Kp * Np,
        transcendentals=2 * M,                                   # sqrt + rcp per row
        bytes_accessed=M * Kp * in_bytes + Kp * Np * 2 + M * Np * 4,
    )

    out = pl.pallas_call(
        _l2norm_linear_kernel,
        out_shape=jax.ShapeDtypeStruct((M, Np), jnp.float32),
        grid=(num_blocks,),
        in_specs=[
            pl.BlockSpec((tm, Kp), lambda i: (i, 0)),   # activations, row-tiled
            # Weight / bias have constant index_maps: fetched once, stay
            # resident in VMEM across all grid steps (no re-tiling needed as
            # tm grows; total working set stays << the scoped VMEM limit).
            pl.BlockSpec((Kp, Np), lambda i: (0, 0)),   # bf16 weight
            pl.BlockSpec((1, Np), lambda i: (0, 0)),    # f32 bias
        ],
        out_specs=pl.BlockSpec((tm, Np), lambda i: (i, 0)),
        compiler_params=pltpu.CompilerParams(
            dimension_semantics=("parallel",),
            vmem_limit_bytes=32 * 1024 * 1024,
        ),
        cost_estimate=cost,
    )(lang_feats, w_packed, b_packed)

    if return_padded or n_out == Np:
        # Lane-dense (M, Np) slab; consumer reads columns [:n_out].  Avoids the
        # narrow-lane (sub-128) column-slice copy.
        return out
    return out[:, :n_out]


# ---------------------------------------------------------------------------
# Pure-JAX reference (matches the PyTorch math) for a tolerance check
# ---------------------------------------------------------------------------
def _reference_forward(lang_feats, w, b):
    x = lang_feats.astype(jnp.float32)
    x = x / (jnp.linalg.norm(x, axis=1, keepdims=True) + 1e-6)
    return x @ w + b


if __name__ == "__main__":
    BATCH = 2
    LANG_FEAT_DIM = 512     # CLIP text feature width
    HIDDEN_SIZE = 32

    key = jax.random.PRNGKey(0)
    k_x, k_w, k_b, k_big = jax.random.split(key, 4)

    # TODO(synk): llm.encode_text is an external frozen CLIP model; inputs here
    # stand in for its pre-encoded (batch, lang_feat_dim) text features.
    lang_feats = jax.random.normal(k_x, (BATCH, LANG_FEAT_DIM), jnp.float32)

    w = 0.02 * jax.random.normal(k_w, (LANG_FEAT_DIM, HIDDEN_SIZE), jnp.float32)
    b = 0.01 * jax.random.normal(k_b, (HIDDEN_SIZE,), jnp.float32)
    w_packed, b_packed = pack_embed_params(w, b)

    # --- small batch, f32 activations, module-exact sliced output -----------
    out = language_extractor_forward(lang_feats, w_packed, b_packed,
                                     n_out=HIDDEN_SIZE)
    out = jax.block_until_ready(out)
    assert out.shape == (BATCH, HIDDEN_SIZE)
    ref = _reference_forward(lang_feats, w, b)
    assert bool(jnp.all(jnp.isfinite(out)))
    assert bool(jnp.allclose(out, ref, rtol=5e-2, atol=1e-3)), "small-batch mismatch"

    # --- large unaligned batch, bf16 activations, lane-dense padded output ---
    # Exercises >=2 grid steps with a partial last row block (no wrapper pad),
    # the in-kernel upcast path, and the padded-output fast path.
    big_feats = jax.random.normal(k_big, (600, LANG_FEAT_DIM), jnp.float32)
    big_feats_bf16 = big_feats.astype(jnp.bfloat16)    # halves the dominant HBM read
    out_big = language_extractor_forward(big_feats_bf16, w_packed, b_packed,
                                         n_out=HIDDEN_SIZE, return_padded=True)
    out_big = jax.block_until_ready(out_big)
    assert out_big.shape == (600, w_packed.shape[1])
    ref_big = _reference_forward(big_feats_bf16.astype(jnp.float32), w, b)
    assert bool(jnp.allclose(out_big[:, :HIDDEN_SIZE], ref_big,
                             rtol=5e-2, atol=2e-3)), "tiled-path mismatch"
    # Padded columns carry zero weight & zero bias -> exactly zero.
    assert bool(jnp.all(out_big[:, HIDDEN_SIZE:] == 0.0))

    print("KERNEL_OK")
</pallas_src>

<mosaic_0001>
module attributes {stable_mosaic.version = 11 : i64} {
  func.func @_l2norm_linear_kernel(%arg0: i32, %arg1: memref<2x512xf32, #tpu.memory_space<vmem>>, %arg2: memref<512x128xbf16, #tpu.memory_space<vmem>>, %arg3: memref<1x128xf32, #tpu.memory_space<vmem>>, %arg4: memref<2x128xf32, #tpu.memory_space<vmem>>) attributes {dimension_semantics = [#tpu.dimension_semantics<parallel>], iteration_bounds = array<i64: 1>, scalar_prefetch = 0 : i64, scratch_operands = 0 : i64, tpu.core_type = #tpu.core_type<tc>, window_params = [{transform_indices = @transform_0, window_bounds = array<i64: 2, 512>}, {pipeline_mode = #tpu.pipeline_mode<synchronous>, transform_indices = @transform_1, window_bounds = array<i64: 512, 128>}, {pipeline_mode = #tpu.pipeline_mode<synchronous>, transform_indices = @transform_2, window_bounds = array<i64: 1, 128>}, {transform_indices = @transform_3, window_bounds = array<i64: 2, 128>}]} {
    %c0 = arith.constant 0 : index
    %c0_0 = arith.constant 0 : index
    %0 = vector.load %arg1[%c0, %c0_0] : memref<2x512xf32, #tpu.memory_space<vmem>>, vector<2x512xf32>
    %1 = arith.mulf %0, %0 : vector<2x512xf32>
    %cst = arith.constant dense<0.000000e+00> : vector<2xf32>
    %2 = vector.multi_reduction <add>, %1, %cst [1] : vector<2x512xf32> to vector<2xf32>
    %3 = vector.shape_cast %2 : vector<2xf32> to vector<2x1xf32>
    %4 = math.sqrt %3 : vector<2x1xf32>
    %cst_1 = arith.constant 9.99999997E-7 : f32
    %5 = vector.broadcast %cst_1 : f32 to vector<2x1xf32>
    %6 = arith.addf %4, %5 : vector<2x1xf32>
    %7 = tpu.reciprocal %6 {approx = true} : vector<2x1xf32> -> vector<2x1xf32>
    %8 = vector.broadcast %7 : vector<2x1xf32> to vector<2x512xf32>
    %9 = arith.mulf %0, %8 : vector<2x512xf32>
    %10 = arith.truncf %9 : vector<2x512xf32> to vector<2x512xbf16>
    %c0_2 = arith.constant 0 : index
    %c0_3 = arith.constant 0 : index
    %11 = vector.load %arg2[%c0_2, %c0_3] : memref<512x128xbf16, #tpu.memory_space<vmem>>, vector<512x128xbf16>
    %cst_4 = arith.constant dense<0.000000e+00> : vector<2x128xf32>
    %12 = tpu.matmul %10, %11, %cst_4 {dimension_numbers = #tpu.dot_dimension_numbers<[1], [0], [0], [1], [0, 0, 1, 1], [], []>} : vector<2x512xbf16>, vector<512x128xbf16>, vector<2x128xf32> -> vector<2x128xf32>
    %c0_5 = arith.constant 0 : index
    %c0_6 = arith.constant 0 : index
    %13 = vector.load %arg3[%c0_5, %c0_6] : memref<1x128xf32, #tpu.memory_space<vmem>>, vector<1x128xf32>
    %14 = vector.broadcast %13 : vector<1x128xf32> to vector<2x128xf32>
    %15 = arith.addf %12, %14 : vector<2x128xf32>
    %c0_7 = arith.constant 0 : index
    %c0_8 = arith.constant 0 : index
    %16 = vector.load %arg4[%c0_7, %c0_8] : memref<2x128xf32, #tpu.memory_space<vmem>>, vector<2x128xf32>
    tpu.vector_store %arg4[%c0_7, %c0_8], %15 {strides = array<i32>} : memref<2x128xf32, #tpu.memory_space<vmem>>, vector<2x128xf32>,
    return
  }
  func.func @transform_0(%arg0: i32) -> (i32, i32) {
    %c0_i32 = arith.constant 0 : i32
    %c0_i32_0 = arith.constant 0 : i32
    return %arg0, %c0_i32 : i32, i32
  }
  func.func @transform_1(%arg0: i32) -> (i32, i32) {
    %c0_i32 = arith.constant 0 : i32
    %c0_i32_0 = arith.constant 0 : i32
    %c0_i32_1 = arith.constant 0 : i32
    return %c0_i32, %c0_i32_0 : i32, i32
  }
  func.func @transform_2(%arg0: i32) -> (i32, i32) {
    %c0_i32 = arith.constant 0 : i32
    %c0_i32_0 = arith.constant 0 : i32
    %c0_i32_1 = arith.constant 0 : i32
    return %c0_i32, %c0_i32_0 : i32, i32
  }
  func.func @transform_3(%arg0: i32) -> (i32, i32) {
    %c0_i32 = arith.constant 0 : i32
    %c0_i32_0 = arith.constant 0 : i32
    return %arg0, %c0_i32 : i32, i32
  }
}

</mosaic_0001>

<llo_original>
// kernel: language_extractor_forward.1
$region0: #{language_extractor_forward.1}
  #allocation0 [shape = 'u32[]', space=smem, size = 0x4, offset = 0x4, fixed_abs, tag = 'smem constant byte address 0x4 - core index']
  #allocation1 [shape = 'u32[144,128]{1,0:T(1,128)}', space=vmem, size = 0x12000, scoped, tag = 'internal scratch']
  %s0 = inlined_call_operand.hbm [shape: f32[2,512], index: 0, kind: input, shape index: {}]
  %s1 = inlined_call_operand.hbm [shape: bf16[512,128], index: 1, kind: input, shape index: {}]
  %s2 = inlined_call_operand.vmem [shape: f32[1,128], index: 2, kind: input, shape index: {}]
  %s3 = inlined_call_operand.hbm [shape: f32[2,128], index: 3, kind: output, shape index: {}]
  %s4 = sld [smem:[#allocation0]]
  $region30: #{language_extractor_forward.1} parent=0
    _
  %s6 = ssub.s32 1, %s4
  %s7 = scalar_select 0, %s6, %s4
  $region1: #{language_extractor_forward.1} parent=0
    #allocation2 [shape = 'u8[4096]{0}', space=vmem, size = 0x1000, scoped, tag = 'input window, operand 0, single buffered']
    #allocation3 [shape = 's32[1]{0}', space=sflag, size = 0x4, scoped, tag = 'scoped memory for language_extractor_forward.1']
    #allocation4 [shape = 's32[1]{0}', space=sflag, size = 0x4, scoped, tag = 'scoped memory for language_extractor_forward.1']
    #allocation5 [shape = 'u8[131072]{0}', space=vmem, size = 0x20000, scoped, tag = 'input window, operand 1, single buffered']
    #allocation6 [shape = 's32[1]{0}', space=sflag, size = 0x4, scoped, tag = 'scoped memory for language_extractor_forward.1']
    #allocation7 [shape = 'u8[1024]{0}', space=vmem, size = 0x400, scoped, tag = 'output window, operand 0, single buffered']
    %8 = vsyncpa [#allocation3], 0
    %9 = vsyncpa [#allocation6], 0
    %10 = vsyncpa [#allocation4], 0
    // Predicated region
    $region2: #{language_extractor_forward.1} parent=1 // pred_check
      _
    $region3: #{language_extractor_forward.1} parent=1 // pred_check_branch
      %12 = sbr.rel (0) target = $region5
    $region4: #{language_extractor_forward.1} parent=1 // pred_region
      %s14 = ssub.s32 128, 128
      %15 = vsyncadd [#allocation3], %s14
      %s17 = sshll.u32 [#allocation2], 4
      %s18 = int_to_ptr.vmem [resolvable:$true] %s17
      %20 = dma.hbm_to_vmem [thread:$0]  %s0, 128, %s18, [#allocation3]
    $region5: #{language_extractor_forward.1} parent=1 // pred_fallthru
      _
    // Predicated region
    $region6: #{language_extractor_forward.1} parent=1 // pred_check
      _
    $region7: #{language_extractor_forward.1} parent=1 // pred_check_branch
      %22 = sbr.rel (0) target = $region9
    $region8: #{language_extractor_forward.1} parent=1 // pred_region
      %s24 = ssub.s32 4096, 4096
      %25 = vsyncadd [#allocation6], %s24
      %s26 = sshll.u32 [#allocation5], 4
      %s27 = int_to_ptr.vmem [resolvable:$true] %s26
      %32 = dma.hbm_to_vmem [thread:$0]  %s1, 4096, %s27, [#allocation6], 64, 64, 4
    $region9: #{language_extractor_forward.1} parent=1 // pred_fallthru
      _
    // Predicated region
    $region10: #{language_extractor_forward.1} parent=1 // pred_check
      _
    $region11: #{language_extractor_forward.1} parent=1 // pred_check_branch
      %34 = sbr.rel (0) target = $region13
    $region12: #{language_extractor_forward.1} parent=1 // pred_region
      _
    $region13: #{language_extractor_forward.1} parent=1 // pred_fallthru
      _
    // Predicated region
    $region14: #{language_extractor_forward.1} parent=1 // pred_check
      _
    $region15: #{language_extractor_forward.1} parent=1 // pred_check_branch
      %36 = sbr.rel (0) target = $region17
    $region16: #{language_extractor_forward.1} parent=1 // pred_region
      %37 = dma.done [#allocation3], 128
    $region17: #{language_extractor_forward.1} parent=1 // pred_fallthru
      _
    // Predicated region
    $region18: #{language_extractor_forward.1} parent=1 // pred_check
      _
    $region19: #{language_extractor_forward.1} parent=1 // pred_check_branch
      %39 = sbr.rel (0) target = $region21
    $region20: #{language_extractor_forward.1} parent=1 // pred_region
      %40 = dma.done [#allocation6], 4096
    $region21: #{language_extractor_forward.1} parent=1 // pred_fallthru
      _
    %v42 = vld [vmem:[#allocation2] sm:$0xff]
    %v43 = vmul.f32 %v42, %v42
    %v45 = vcombine.high %v43, %v43
    %v47 = vunpack.c.l.s4 1983009808
    %v48 = vunpack.c.0.s8 %v47
    %v49 = vlaneseq
    %v50 = vshrl.u32 %v49, 7
    %v51 = vsub.s32 %v48, %v50
    %v52 = vrot.slane %v43, %v51
    %v54 = vunpack.c.l.s4 1983009808
    %v55 = vunpack.c.0.s8 %v54
    %v56 = vlaneseq
    %v57 = vshrl.u32 %v56, 7
    %v58 = vsub.s32 %v55, %v57
    %v59 = vrot.slane %v45, %v58
    %v60 = vcombine.high %v52, %v52
    %v61 = vcombine.high %v59, %v59
    %vm66 = vcmask 1041408
    %v67 = vsel %vm66, %v52, 0.0
    %v68 = vsel %vm66, %v60, 0.0
    %v69 = vadd.f32 %v67, %v68
    %v70 = vsel %vm66, %v59, 0.0
    %v71 = vadd.f32 %v69, %v70
    %v72 = vsel %vm66, %v61, 0.0
    %v73 = vadd.f32 %v71, %v72
    %74 = vadd.xlane.f32.xlu0 %v73
    %v75 = vpop.xlane.xlu0 %74
    %v76 = vrsqrt.pop %v75
    %v77 = vmul.f32 %v75, %v76
    %vm78 = vcmp.eq.f32.partialorder %v75, inf
    %v79 = vsel %vm78, %v75, %v77
    %vm80 = vcmp.eq.f32.partialorder %v75, 0.0
    %v81 = vand.u32 %v75, 2147483648
    %v82 = vsel %vm80, %v81, %v79
    %v83 = vadd.f32 %v82, 1e-06
    %v84 = vrcp.pop %v83
    %v87 = vunpack.c.l.s4 269488144
    %v88 = vunpack.c.0.s8 %v87
    %v89 = vlaneseq
    %v90 = vshrl.u32 %v89, 7
    %v91 = vsub.s32 %v88, %v90
    %v92 = vrot.slane %v84, %v91
    %v94 = vmul.f32 %v42, %v92
    %v96 = vcombine.high %v94, %v94
    %v98 = vunpack.c.l.s4 1983009808
    %v99 = vunpack.c.0.s8 %v98
    %v100 = vlaneseq
    %v101 = vshrl.u32 %v100, 7
    %v102 = vsub.s32 %v99, %v101
    %v103 = vrot.slane %v94, %v102
    %v105 = vunpack.c.l.s4 1983009808
    %v106 = vunpack.c.0.s8 %v105
    %v107 = vlaneseq
    %v108 = vshrl.u32 %v107, 7
    %v109 = vsub.s32 %v106, %v108
    %v110 = vrot.slane %v96, %v109
    %v111 = vcombine.high %v103, %v103
    %v112 = vcombine.high %v110, %v110
    %v117 = vpack.c.bf16 %v103, %v103
    %v118 = vpack.c.bf16 %v111, %v111
    %v119 = vpack.c.bf16 %v110, %v110
    %v120 = vpack.c.bf16 %v112, %v112
    %v121 = vld [vmem:[#allocation5] sm:$0xf]
    %v122 = vld [vmem:[#allocation5 + $0x4] sm:$0xf]
    %v123 = vld [vmem:[#allocation5 + $0x8] sm:$0xf]
    %v124 = vld [vmem:[#allocation5 + $0xc] sm:$0xf]
    %v125 = vld [vmem:[#allocation5 + $0x10] sm:$0xf]
    %v126 = vld [vmem:[#allocation5 + $0x14] sm:$0xf]
    %v127 = vld [vmem:[#allocation5 + $0x18] sm:$0xf]
    %v128 = vld [vmem:[#allocation5 + $0x1c] sm:$0xf]
    %v129 = vld [vmem:[#allocation5 + $0x20] sm:$0xf]
    %v130 = vld [vmem:[#allocation5 + $0x24] sm:$0xf]
    %v131 = vld [vmem:[#allocation5 + $0x28] sm:$0xf]
    %v132 = vld [vmem:[#allocation5 + $0x2c] sm:$0xf]
    %v133 = vld [vmem:[#allocation5 + $0x30] sm:$0xf]
    %v134 = vld [vmem:[#allocation5 + $0x34] sm:$0xf]
    %v135 = vld [vmem:[#allocation5 + $0x38] sm:$0xf]
    %v136 = vld [vmem:[#allocation5 + $0x3c] sm:$0xf]
    %v137 = vld [vmem:[#allocation5 + $0x40] sm:$0xf]
    %v138 = vld [vmem:[#allocation5 + $0x44] sm:$0xf]
    %v139 = vld [vmem:[#allocation5 + $0x48] sm:$0xf]
    %v140 = vld [vmem:[#allocation5 + $0x4c] sm:$0xf]
    %v141 = vld [vmem:[#allocation5 + $0x50] sm:$0xf]
    %v142 = vld [vmem:[#allocation5 + $0x54] sm:$0xf]
    %v143 = vld [vmem:[#allocation5 + $0x58] sm:$0xf]
    %v144 = vld [vmem:[#allocation5 + $0x5c] sm:$0xf]
    %v145 = vld [vmem:[#allocation5 + $0x60] sm:$0xf]
    %v146 = vld [vmem:[#allocation5 + $0x64] sm:$0xf]
    %v147 = vld [vmem:[#allocation5 + $0x68] sm:$0xf]
    %v148 = vld [vmem:[#allocation5 + $0x6c] sm:$0xf]
    %v149 = vld [vmem:[#allocation5 + $0x70] sm:$0xf]
    %v150 = vld [vmem:[#allocation5 + $0x74] sm:$0xf]
    %v151 = vld [vmem:[#allocation5 + $0x78] sm:$0xf]
    %v152 = vld [vmem:[#allocation5 + $0x7c] sm:$0xf]
    %v153 = vld [vmem:[#allocation5 + $0x80] sm:$0xf]
    %v154 = vld [vmem:[#allocation5 + $0x84] sm:$0xf]
    %v155 = vld [vmem:[#allocation5 + $0x88] sm:$0xf]
    %v156 = vld [vmem:[#allocation5 + $0x8c] sm:$0xf]
    %v157 = vld [vmem:[#allocation5 + $0x90] sm:$0xf]
    %v158 = vld [vmem:[#allocation5 + $0x94] sm:$0xf]
    %v159 = vld [vmem:[#allocation5 + $0x98] sm:$0xf]
    %v160 = vld [vmem:[#allocation5 + $0x9c] sm:$0xf]
    %v161 = vld [vmem:[#allocation5 + $0xa0] sm:$0xf]
    %v162 = vld [vmem:[#allocation5 + $0xa4] sm:$0xf]
    %v163 = vld [vmem:[#allocation5 + $0xa8] sm:$0xf]
    %v164 = vld [vmem:[#allocation5 + $0xac] sm:$0xf]
    %v165 = vld [vmem:[#allocation5 + $0xb0] sm:$0xf]
    %v166 = vld [vmem:[#allocation5 + $0xb4] sm:$0xf]
    %v167 = vld [vmem:[#allocation5 + $0xb8] sm:$0xf]
    %v168 = vld [vmem:[#allocation5 + $0xbc] sm:$0xf]
    %v169 = vld [vmem:[#allocation5 + $0xc0] sm:$0xf]
    %v170 = vld [vmem:[#allocation5 + $0xc4] sm:$0xf]
    %v171 = vld [vmem:[#allocation5 + $0xc8] sm:$0xf]
    %v172 = vld [vmem:[#allocation5 + $0xcc] sm:$0xf]
    %v173 = vld [vmem:[#allocation5 + $0xd0] sm:$0xf]
    %v174 = vld [vmem:[#allocation5 + $0xd4] sm:$0xf]
    %v175 = vld [vmem:[#allocation5 + $0xd8] sm:$0xf]
    %v176 = vld [vmem:[#allocation5 + $0xdc] sm:$0xf]
    %v177 = vld [vmem:[#allocation5 + $0xe0] sm:$0xf]
    %v178 = vld [vmem:[#allocation5 + $0xe4] sm:$0xf]
    %v179 = vld [vmem:[#allocation5 + $0xe8] sm:$0xf]
    %v180 = vld [vmem:[#allocation5 + $0xec] sm:$0xf]
    %v181 = vld [vmem:[#allocation5 + $0xf0] sm:$0xf]
    %v182 = vld [vmem:[#allocation5 + $0xf4] sm:$0xf]
    %v183 = vld [vmem:[#allocation5 + $0xf8] sm:$0xf]
    %v184 = vld [vmem:[#allocation5 + $0xfc] sm:$0xf]
    %v185 = vld [vmem:[%s2] sm:$0x1]
    %v187 = vlaneseq
    %v188 = vshrl.u32 %v187, 7
    %v189 = vsub.s32 0, %v188
    %v190 = vrot.slane %v185, %v189
    %v256 = vunpack.c.l.b16 %v121
    %v257 = vunpack.c.l.b16 %v122
    %v258 = vunpack.c.l.b16 %v123
    %v259 = vunpack.c.l.b16 %v124
    %v260 = vunpack.c.l.b16 %v125
    %v261 = vunpack.c.l.b16 %v126
    %v262 = vunpack.c.l.b16 %v127
    %v263 = vunpack.c.l.b16 %v128
    %v264 = vunpack.c.l.b16 %v129
    %v265 = vunpack.c.l.b16 %v130
    %v266 = vunpack.c.l.b16 %v131
    %v267 = vunpack.c.l.b16 %v132
    %v268 = vunpack.c.l.b16 %v133
    %v269 = vunpack.c.l.b16 %v134
    %v270 = vunpack.c.l.b16 %v135
    %v271 = vunpack.c.l.b16 %v136
    %v272 = vunpack.c.l.b16 %v137
    %v273 = vunpack.c.l.b16 %v138
    %v274 = vunpack.c.l.b16 %v139
    %v275 = vunpack.c.l.b16 %v140
    %v276 = vunpack.c.l.b16 %v141
    %v277 = vunpack.c.l.b16 %v142
    %v278 = vunpack.c.l.b16 %v143
    %v279 = vunpack.c.l.b16 %v144
    %v280 = vunpack.c.l.b16 %v145
    %v281 = vunpack.c.l.b16 %v146
    %v282 = vunpack.c.l.b16 %v147
    %v283 = vunpack.c.l.b16 %v148
    %v284 = vunpack.c.l.b16 %v149
    %v285 = vunpack.c.l.b16 %v150
    %v286 = vunpack.c.l.b16 %v151
    %v287 = vunpack.c.l.b16 %v152
    %v288 = vunpack.c.l.b16 %v153
    %v289 = vunpack.c.l.b16 %v154
    %v290 = vunpack.c.l.b16 %v155
    %v291 = vunpack.c.l.b16 %v156
    %v292 = vunpack.c.l.b16 %v157
    %v293 = vunpack.c.l.b16 %v158
    %v294 = vunpack.c.l.b16 %v159
    %v295 = vunpack.c.l.b16 %v160
    %v296 = vunpack.c.l.b16 %v161
    %v297 = vunpack.c.l.b16 %v162
    %v298 = vunpack.c.l.b16 %v163
    %v299 = vunpack.c.l.b16 %v164
    %v300 = vunpack.c.l.b16 %v165
    %v301 = vunpack.c.l.b16 %v166
    %v302 = vunpack.c.l.b16 %v167
    %v303 = vunpack.c.l.b16 %v168
    %v304 = vunpack.c.l.b16 %v169
    %v305 = vunpack.c.l.b16 %v170
    %v306 = vunpack.c.l.b16 %v171
    %v307 = vunpack.c.l.b16 %v172
    %v308 = vunpack.c.l.b16 %v173
    %v309 = vunpack.c.l.b16 %v174
    %v310 = vunpack.c.l.b16 %v175
    %v311 = vunpack.c.l.b16 %v176
    %v312 = vunpack.c.l.b16 %v177
    %v313 = vunpack.c.l.b16 %v178
    %v314 = vunpack.c.l.b16 %v179
    %v315 = vunpack.c.l.b16 %v180
    %v316 = vunpack.c.l.b16 %v181
    %v317 = vunpack.c.l.b16 %v182
    %v318 = vunpack.c.l.b16 %v183
    %v319 = vunpack.c.l.b16 %v184
    %v320 = vpack.c.b16 %v257, %v256
    %v321 = vpack.c.b16 %v259, %v258
    %v322 = vpack.c.b16 %v261, %v260
    %v323 = vpack.c.b16 %v263, %v262
    %v324 = vpack.c.b16 %v265, %v264
    %v325 = vpack.c.b16 %v267, %v266
    %v326 = vpack.c.b16 %v269, %v268
    %v327 = vpack.c.b16 %v271, %v270
    %v328 = vpack.c.b16 %v273, %v272
    %v329 = vpack.c.b16 %v275, %v274
    %v330 = vpack.c.b16 %v277, %v276
    %v331 = vpack.c.b16 %v279, %v278
    %v332 = vpack.c.b16 %v281, %v280
    %v333 = vpack.c.b16 %v283, %v282
    %v334 = vpack.c.b16 %v285, %v284
    %v335 = vpack.c.b16 %v287, %v286
    %v336 = vpack.c.b16 %v289, %v288
    %v337 = vpack.c.b16 %v291, %v290
    %v338 = vpack.c.b16 %v293, %v292
    %v339 = vpack.c.b16 %v295, %v294
    %v340 = vpack.c.b16 %v297, %v296
    %v341 = vpack.c.b16 %v299, %v298
    %v342 = vpack.c.b16 %v301, %v300
    %v343 = vpack.c.b16 %v303, %v302
    %v344 = vpack.c.b16 %v305, %v304
    %v345 = vpack.c.b16 %v307, %v306
    %v346 = vpack.c.b16 %v309, %v308
    %v347 = vpack.c.b16 %v311, %v310
    %v348 = vpack.c.b16 %v313, %v312
    %v349 = vpack.c.b16 %v315, %v314
    %v350 = vpack.c.b16 %v317, %v316
    %v351 = vpack.c.b16 %v319, %v318
    %384 = vmatprep.subr.bf16.mxu0 0
    %385 = vmatpush1.bf16.msra.mxu0 %v320
    %386 = vmatprep.subr.bf16.mxu0 0
    %387 = vmatpush1.bf16.msra.mxu0 %v321
    %388 = vmatprep.subr.bf16.mxu0 0
    %389 = vmatpush1.bf16.msra.mxu0 %v322
    %390 = vmatprep.subr.bf16.mxu0 0
    %391 = vmatpush1.bf16.msra.mxu0 %v323
    %392 = vmatprep.subr.bf16.mxu0 0
    %393 = vmatpush1.bf16.msra.mxu0 %v324
    %394 = vmatprep.subr.bf16.mxu0 0
    %395 = vmatpush1.bf16.msra.mxu0 %v325
    %396 = vmatprep.subr.bf16.mxu0 0
    %397 = vmatpush1.bf16.msra.mxu0 %v326
    %398 = vmatprep.subr.bf16.mxu0 0
    %399 = vmatpush1.bf16.msra.mxu0 %v327
    %400 = vmatprep.subr.bf16.mxu0 0
    %401 = vmatpush1.bf16.msra.mxu0 %v328
    %402 = vmatprep.subr.bf16.mxu0 0
    %403 = vmatpush1.bf16.msra.mxu0 %v329
    %404 = vmatprep.subr.bf16.mxu0 0
    %405 = vmatpush1.bf16.msra.mxu0 %v330
    %406 = vmatprep.subr.bf16.mxu0 0
    %407 = vmatpush1.bf16.msra.mxu0 %v331
    %408 = vmatprep.subr.bf16.mxu0 0
    %409 = vmatpush1.bf16.msra.mxu0 %v332
    %410 = vmatprep.subr.bf16.mxu0 0
    %411 = vmatpush1.bf16.msra.mxu0 %v333
    %412 = vmatprep.subr.bf16.mxu0 0
    %413 = vmatpush1.bf16.msra.mxu0 %v334
    %414 = vmatprep.subr.bf16.mxu0 0
    %415 = vmatpush1.bf16.msra.mxu0 %v335
    %416 = vmatprep.mubr.bf16.mxu0 %v118
    %417 = vmatmul.mubr.bf16.gmra.mrb[0].mxu0 %v117
    %v418 = vpop.f32.mrb[0].mxu0
    %v419 = vadd.f32 %v190, %v418
    %v420 = vpop.f32.mrb[0].mxu0
    %v421 = vpop.f32.mrb[0].mxu0
    %v422 = vpop.f32.mrb[0].mxu0
    %423 = vdwg.mxu0
    %424 = vmatprep.subr.bf16.mxu0 0
    %425 = vmatpush1.bf16.msra.mxu0 %v336
    %426 = vmatprep.subr.bf16.mxu0 0
    %427 = vmatpush1.bf16.msra.mxu0 %v337
    %428 = vmatprep.subr.bf16.mxu0 0
    %429 = vmatpush1.bf16.msra.mxu0 %v338
    %430 = vmatprep.subr.bf16.mxu0 0
    %431 = vmatpush1.bf16.msra.mxu0 %v339
    %432 = vmatprep.subr.bf16.mxu0 0
    %433 = vmatpush1.bf16.msra.mxu0 %v340
    %434 = vmatprep.subr.bf16.mxu0 0
    %435 = vmatpush1.bf16.msra.mxu0 %v341
    %436 = vmatprep.subr.bf16.mxu0 0
    %437 = vmatpush1.bf16.msra.mxu0 %v342
    %438 = vmatprep.subr.bf16.mxu0 0
    %439 = vmatpush1.bf16.msra.mxu0 %v343
    %440 = vmatprep.subr.bf16.mxu0 0
    %441 = vmatpush1.bf16.msra.mxu0 %v344
    %442 = vmatprep.subr.bf16.mxu0 0
    %443 = vmatpush1.bf16.msra.mxu0 %v345
    %444 = vmatprep.subr.bf16.mxu0 0
    %445 = vmatpush1.bf16.msra.mxu0 %v346
    %446 = vmatprep.subr.bf16.mxu0 0
    %447 = vmatpush1.bf16.msra.mxu0 %v347
    %448 = vmatprep.subr.bf16.mxu0 0
    %449 = vmatpush1.bf16.msra.mxu0 %v348
    %450 = vmatprep.subr.bf16.mxu0 0
    %451 = vmatpush1.bf16.msra.mxu0 %v349
    %452 = vmatprep.subr.bf16.mxu0 0
    %453 = vmatpush1.bf16.msra.mxu0 %v350
    %454 = vmatprep.subr.bf16.mxu0 0
    %455 = vmatpush1.bf16.msra.mxu0 %v351
    %456 = vmatprep.mubr.bf16.mxu0 %v120
    %457 = vmatmul.mubr.bf16.gmra.mrb[0].mxu0 %v119
    %v458 = vpop.f32.mrb[0].mxu0
    %v459 = vadd.f32 %v419, %v458
    %v460 = vpop.f32.mrb[0].mxu0
    %v461 = vpop.f32.mrb[0].mxu0
    %v462 = vpop.f32.mrb[0].mxu0
    %463 = vdwg.mxu0
    %464 = vst [vmem:[#allocation7] sm:$0x3] %v459
    // Predicated region
    $region22: #{language_extractor_forward.1} parent=1 // pred_check
      _
    $region23: #{language_extractor_forward.1} parent=1 // pred_check_branch
      %466 = sbr.rel (0) target = $region25
    $region24: #{language_extractor_forward.1} parent=1 // pred_region
      %s468 = ssub.s32 32, 32
      %469 = vsyncadd [#allocation4], %s468
      %s471 = sshll.u32 [#allocation7], 4
      %s472 = int_to_ptr.vmem [resolvable:$true] %s471
      %474 = dma.vmem_to_hbm [thread:$0]  %s472, 32, %s3, [#allocation4]
    $region25: #{language_extractor_forward.1} parent=1 // pred_fallthru
      _
    // Predicated region
    $region26: #{language_extractor_forward.1} parent=1 // pred_check
      _
    $region27: #{language_extractor_forward.1} parent=1 // pred_check_branch
      %476 = sbr.rel (0) target = $region29
    $region28: #{language_extractor_forward.1} parent=1 // pred_region
      %477 = dma.done [#allocation4], 32
    $region29: #{language_extractor_forward.1} parent=1 // pred_fallthru
      _
    %478 = vsyncpa [#allocation3], 1
    %479 = vsyncpa [#allocation6], 1
    %480 = vsyncpa [#allocation4], 1

</llo_original>
